<compile_context>
chip_gen: v7x
topology: tpu7x:2x2x1
jax: 0.10.0
libtpu: 0.0.40
codegen_flags: <defaults>
</compile_context>

<pallas_src>
import jax
import jax.numpy as jnp
from jax import lax
from jax.experimental import pallas as pl
from jax.experimental.pallas import tpu as pltpu
import numpy as np

nChannel = 4          # global used by the PyTorch module
n_neurons = 100       # hidden width of the statistics network

DIN = 2 * nChannel    # input width (8) — NOT lane-padded
H_PAD = 128           # lane-padded hidden width


def mine_kernel(idx_a_ref, idx_b_ref, xf_ref,
                w1_ref, b1_ref, w2_ref, b2_ref, w3_ref, b3_ref, out_ref):
    """Single-step kernel: gather + fused MLP + MI lower bound.

    idx_a_ref : (2N, 1) int32  source row (channels 0:C)   = [ind ; ind]
    idx_b_ref : (2N, 1) int32  source row (channels C:2C)  = [ind ; ind_perm]
    xf_ref    : (A*B, 2C) f32  flattened x
    w1_ref    : (2C, 128) bf16     b1_ref : (1, 128) f32
    w2_ref    : (128, 128) bf16    b2_ref : (1, 128) f32
    w3_ref    : (1, 128)   f32     b3_ref : (1, 1)   f32
    out_ref   : (1, 1) f32  -> MI_lb
    """
    two_n = idx_a_ref.shape[0]
    ab, d = xf_ref.shape
    n = two_n // 2

    # --- in-kernel gather: one-hot (2N, A*B) selection matrices -> MXU matmul.
    col = lax.broadcasted_iota(jnp.int32, (two_n, ab), 1)
    sa = (col == idx_a_ref[...]).astype(jnp.bfloat16)          # (2N, AB)
    sb = (col == idx_b_ref[...]).astype(jnp.bfloat16)          # (2N, AB)
    xf = xf_ref[...].astype(jnp.bfloat16)                      # (AB, 2C)

    xa = jnp.dot(sa, xf, preferred_element_type=jnp.float32)   # rows by idx_a
    xb = jnp.dot(sb, xf, preferred_element_type=jnp.float32)   # rows by idx_b

    # channel blend: lanes [0,C) from idx_a rows, lanes [C,2C) from idx_b rows.
    lane = lax.broadcasted_iota(jnp.int32, (two_n, d), 1)
    x_fused = jnp.where(lane < nChannel, xa, xb).astype(jnp.bfloat16)  # (2N, 2C)

    # --- statistics MLP (bf16 MXU matmuls, f32 accumulation / bias / ReLU).
    h1 = jnp.dot(x_fused, w1_ref[...], preferred_element_type=jnp.float32) + b1_ref[...]
    h1 = jnp.maximum(h1, 0.0).astype(jnp.bfloat16)
    h2 = jnp.dot(h1, w2_ref[...], preferred_element_type=jnp.float32) + b2_ref[...]
    h2 = jnp.maximum(h2, 0.0)                                   # (2N, 128) f32

    # fc3 (output width 1) folded into VPU multiply + XLU lane reduction.
    z = jnp.sum(h2 * w3_ref[...], axis=1, keepdims=True) + b3_ref[...]   # (2N, 1)

    # --- joint / marginal statistics via row mask; LSE-stable exp.
    row = lax.broadcasted_iota(jnp.int32, (two_n, 1), 0)
    joint = row < n                                             # rows [0,N) joint
    sum_z1 = jnp.sum(jnp.where(joint, z, 0.0), keepdims=True)   # (1,1)
    z2m = jnp.where(joint, -jnp.inf, z)                         # marginal rows only
    max_z2 = jnp.max(z2m, keepdims=True)                        # (1,1)
    sum_exp = jnp.sum(jnp.exp(z2m - max_z2), keepdims=True)     # exp(-inf)=0 on joint

    inv_n = 1.0 / n
    mi = sum_z1 * inv_n - (max_z2 + jnp.log(sum_exp * inv_n))   # (1,1)
    out_ref[...] = mi


def init_mine_params(key):
    """Deterministic init matching torch.nn.Linear default (uniform +-1/sqrt(fan_in)).

    Weights are transposed to (in, out); hidden width zero-padded to 128 lanes;
    matmul weights stored in bfloat16 (biases / fc3 row stay f32).
    """
    def linear(key, fan_in, fan_out):
        kw, kb = jax.random.split(key)
        bound = 1.0 / np.sqrt(fan_in)
        w = jax.random.uniform(kw, (fan_out, fan_in), jnp.float32, -bound, bound)
        b = jax.random.uniform(kb, (fan_out,), jnp.float32, -bound, bound)
        return w, b

    k1, k2, k3 = jax.random.split(key, 3)
    w1, b1 = linear(k1, DIN, n_neurons)        # (100, 8), (100,)
    w2, b2 = linear(k2, n_neurons, n_neurons)  # (100, 100), (100,)
    w3, b3 = linear(k3, n_neurons, 1)          # (1, 100), (1,)

    w1p = (jnp.zeros((DIN, H_PAD), jnp.float32)
           .at[:, :n_neurons].set(w1.T).astype(jnp.bfloat16))          # (8, 128)
    b1p = jnp.zeros((1, H_PAD), jnp.float32).at[0, :n_neurons].set(b1)
    w2p = (jnp.zeros((H_PAD, H_PAD), jnp.float32)
           .at[:n_neurons, :n_neurons].set(w2.T).astype(jnp.bfloat16))
    b2p = jnp.zeros((1, H_PAD), jnp.float32).at[0, :n_neurons].set(b2)
    w3p = jnp.zeros((1, H_PAD), jnp.float32).at[0, :n_neurons].set(w3[0])
    b3p = jnp.reshape(b3, (1, 1))
    return (w1p, b1p, w2p, b2p, w3p, b3p)


@jax.jit
def mine_forward(x, ind, perm_key, params):
    """MINE.forward(x, ind) with bsize=1.

    x   : (A, B, 2*nChannel) f32
    ind : (N,) int32 indices into the flattened rows
    """
    w1p, b1p, w2p, b2p, w3p, b3p = params
    A, B, D = x.shape
    AB = A * B
    xf = jnp.reshape(x, (AB, D))                 # metadata-only reshape
    N = ind.shape[0]

    # torch.randperm glue — permutation itself must stay outside the kernel.
    ind_perm = jax.random.permutation(perm_key, ind)
    # Row-index columns for the fused batch (rows [0,N) joint, [N,2N) marginal).
    idx_a = jnp.concatenate([ind, ind]).reshape(2 * N, 1).astype(jnp.int32)
    idx_b = jnp.concatenate([ind, ind_perm]).reshape(2 * N, 1).astype(jnp.int32)

    flops = (2 * 2 * (2 * N) * AB * D            # two one-hot gather matmuls
             + 2 * (2 * N) * D * H_PAD           # fc1
             + 2 * (2 * N) * H_PAD * H_PAD       # fc2
             + 2 * (2 * N) * H_PAD)              # fc3 fold
    bytes_accessed = (2 * (2 * N) * 4 + AB * D * 4
                      + DIN * H_PAD * 2 + H_PAD * 4
                      + H_PAD * H_PAD * 2 + H_PAD * 4
                      + H_PAD * 4 + 4 + 4)

    mi = pl.pallas_call(
        mine_kernel,
        out_shape=jax.ShapeDtypeStruct((1, 1), jnp.float32),
        grid=(1,),
        in_specs=[
            pl.BlockSpec((2 * N, 1), lambda i: (0, 0)),       # idx_a
            pl.BlockSpec((2 * N, 1), lambda i: (0, 0)),       # idx_b
            pl.BlockSpec((AB, D), lambda i: (0, 0)),          # xf (f32, unpadded)
            pl.BlockSpec((DIN, H_PAD), lambda i: (0, 0)),     # w1
            pl.BlockSpec((1, H_PAD), lambda i: (0, 0)),       # b1
            pl.BlockSpec((H_PAD, H_PAD), lambda i: (0, 0)),   # w2
            pl.BlockSpec((1, H_PAD), lambda i: (0, 0)),       # b2
            pl.BlockSpec((1, H_PAD), lambda i: (0, 0)),       # w3 row
            pl.BlockSpec((1, 1), lambda i: (0, 0)),           # b3
        ],
        out_specs=pl.BlockSpec((1, 1), lambda i: (0, 0)),
        cost_estimate=pl.CostEstimate(
            flops=int(flops),
            transcendentals=2 * N + 1,
            bytes_accessed=int(bytes_accessed)),
    )(idx_a, idx_b, xf, w1p, b1p, w2p, b2p, w3p, b3p)

    return mi[0, 0]                               # bsize = 1 -> no averaging


def mine_forward_ref(x, ind, perm_key, params):
    """Pure-JAX reference (same padded params, same bf16 matmul math)."""
    w1p, b1p, w2p, b2p, w3p, b3p = params
    A, B, D = x.shape
    xf = jnp.reshape(x, (A * B, D))
    ind_perm = jax.random.permutation(perm_key, ind)
    x_joint = xf[ind, :]
    x_marg = jnp.concatenate(
        [xf[ind, 0:nChannel], xf[ind_perm, nChannel:2 * nChannel]], axis=1)

    def mlp(xr):
        xb = xr.astype(jnp.bfloat16)
        h1 = jnp.maximum(
            jnp.dot(xb, w1p, preferred_element_type=jnp.float32) + b1p, 0.0)
        h2 = jnp.maximum(
            jnp.dot(h1.astype(jnp.bfloat16), w2p,
                    preferred_element_type=jnp.float32) + b2p, 0.0)
        return jnp.sum(h2 * w3p, axis=1, keepdims=True) + b3p

    z1 = mlp(x_joint)
    z2 = mlp(x_marg)
    return jnp.mean(z1) - jnp.log(jnp.mean(jnp.exp(z2)))


if __name__ == "__main__":
    key = jax.random.PRNGKey(0)
    k_params, k_x, k_ind, k_perm = jax.random.split(key, 4)

    params = init_mine_params(k_params)

    # x: (A=2, B=64, 2*nChannel=8) -> 128 flattened rows; N=64 gathered samples.
    A, B = 2, 64
    x = jax.random.normal(k_x, (A, B, 2 * nChannel), dtype=jnp.float32)
    N = 64
    ind = jax.random.randint(k_ind, (N,), 0, A * B, dtype=jnp.int32)

    out = mine_forward(x, ind, k_perm, params)
    out = jax.block_until_ready(out)

    ref = mine_forward_ref(x, ind, k_perm, params)
    np.testing.assert_allclose(np.asarray(out), np.asarray(ref), rtol=1e-3, atol=1e-3)

    print("KERNEL_OK")
</pallas_src>

<mosaic_0001>
module attributes {stable_mosaic.version = 11 : i64} {
  func.func @mine_kernel(%arg0: i32, %arg1: memref<128x1xi32, #tpu.memory_space<vmem>>, %arg2: memref<128x1xi32, #tpu.memory_space<vmem>>, %arg3: memref<128x8xf32, #tpu.memory_space<vmem>>, %arg4: memref<8x128xbf16, #tpu.memory_space<vmem>>, %arg5: memref<1x128xf32, #tpu.memory_space<vmem>>, %arg6: memref<128x128xbf16, #tpu.memory_space<vmem>>, %arg7: memref<1x128xf32, #tpu.memory_space<vmem>>, %arg8: memref<1x128xf32, #tpu.memory_space<vmem>>, %arg9: memref<1x1xf32, #tpu.memory_space<vmem>>, %arg10: memref<1x1xf32, #tpu.memory_space<vmem>>) attributes {dimension_semantics = [#tpu.dimension_semantics<arbitrary>], iteration_bounds = array<i64: 1>, scalar_prefetch = 0 : i64, scratch_operands = 0 : i64, tpu.core_type = #tpu.core_type<tc>, window_params = [{pipeline_mode = #tpu.pipeline_mode<synchronous>, transform_indices = @transform_0, window_bounds = array<i64: 128, 1>}, {pipeline_mode = #tpu.pipeline_mode<synchronous>, transform_indices = @transform_1, window_bounds = array<i64: 128, 1>}, {pipeline_mode = #tpu.pipeline_mode<synchronous>, transform_indices = @transform_2, window_bounds = array<i64: 128, 8>}, {pipeline_mode = #tpu.pipeline_mode<synchronous>, transform_indices = @transform_3, window_bounds = array<i64: 8, 128>}, {pipeline_mode = #tpu.pipeline_mode<synchronous>, transform_indices = @transform_4, window_bounds = array<i64: 1, 128>}, {pipeline_mode = #tpu.pipeline_mode<synchronous>, transform_indices = @transform_5, window_bounds = array<i64: 128, 128>}, {pipeline_mode = #tpu.pipeline_mode<synchronous>, transform_indices = @transform_6, window_bounds = array<i64: 1, 128>}, {pipeline_mode = #tpu.pipeline_mode<synchronous>, transform_indices = @transform_7, window_bounds = array<i64: 1, 128>}, {pipeline_mode = #tpu.pipeline_mode<synchronous>, transform_indices = @transform_8, window_bounds = array<i64: 1, 1>}, {pipeline_mode = #tpu.pipeline_mode<synchronous>, transform_indices = @transform_9, window_bounds = array<i64: 1, 1>}]} {
    %0 = tpu.iota {dimensions = array<i32: 1>} : vector<128x128xi32>
    %c0 = arith.constant 0 : index
    %c0_0 = arith.constant 0 : index
    %1 = vector.load %arg1[%c0, %c0_0] : memref<128x1xi32, #tpu.memory_space<vmem>>, vector<128x1xi32>
    %2 = vector.broadcast %1 : vector<128x1xi32> to vector<128x128xi32>
    %3 = arith.cmpi eq, %0, %2 : vector<128x128xi32>
    %4 = arith.extui %3 : vector<128x128xi1> to vector<128x128xi32>
    %5 = arith.sitofp %4 : vector<128x128xi32> to vector<128x128xf32>
    %6 = arith.truncf %5 : vector<128x128xf32> to vector<128x128xbf16>
    %c0_1 = arith.constant 0 : index
    %c0_2 = arith.constant 0 : index
    %7 = vector.load %arg2[%c0_1, %c0_2] : memref<128x1xi32, #tpu.memory_space<vmem>>, vector<128x1xi32>
    %8 = vector.broadcast %7 : vector<128x1xi32> to vector<128x128xi32>
    %9 = arith.cmpi eq, %0, %8 : vector<128x128xi32>
    %10 = arith.extui %9 : vector<128x128xi1> to vector<128x128xi32>
    %11 = arith.sitofp %10 : vector<128x128xi32> to vector<128x128xf32>
    %12 = arith.truncf %11 : vector<128x128xf32> to vector<128x128xbf16>
    %c0_3 = arith.constant 0 : index
    %c0_4 = arith.constant 0 : index
    %13 = vector.load %arg3[%c0_3, %c0_4] : memref<128x8xf32, #tpu.memory_space<vmem>>, vector<128x8xf32>
    %14 = arith.truncf %13 : vector<128x8xf32> to vector<128x8xbf16>
    %cst = arith.constant dense<0.000000e+00> : vector<128x8xf32>
    %15 = tpu.matmul %6, %14, %cst {dimension_numbers = #tpu.dot_dimension_numbers<[1], [0], [0], [1], [0, 0, 1, 1], [], []>} : vector<128x128xbf16>, vector<128x8xbf16>, vector<128x8xf32> -> vector<128x8xf32>
    %cst_5 = arith.constant dense<0.000000e+00> : vector<128x8xf32>
    %16 = tpu.matmul %12, %14, %cst_5 {dimension_numbers = #tpu.dot_dimension_numbers<[1], [0], [0], [1], [0, 0, 1, 1], [], []>} : vector<128x128xbf16>, vector<128x8xbf16>, vector<128x8xf32> -> vector<128x8xf32>
    %17 = tpu.iota {dimensions = array<i32: 1>} : vector<128x8xi32>
    %c4_i32 = arith.constant 4 : i32
    %18 = vector.broadcast %c4_i32 : i32 to vector<128x8xi32>
    %19 = arith.cmpi slt, %17, %18 : vector<128x8xi32>
    %20 = arith.select %19, %15, %16 : vector<128x8xi1>, vector<128x8xf32>
    %21 = arith.truncf %20 : vector<128x8xf32> to vector<128x8xbf16>
    %c0_6 = arith.constant 0 : index
    %c0_7 = arith.constant 0 : index
    %22 = vector.load %arg4[%c0_6, %c0_7] : memref<8x128xbf16, #tpu.memory_space<vmem>>, vector<8x128xbf16>
    %cst_8 = arith.constant dense<0.000000e+00> : vector<128x128xf32>
    %23 = tpu.matmul %21, %22, %cst_8 {dimension_numbers = #tpu.dot_dimension_numbers<[1], [0], [0], [1], [0, 0, 1, 1], [], []>} : vector<128x8xbf16>, vector<8x128xbf16>, vector<128x128xf32> -> vector<128x128xf32>
    %c0_9 = arith.constant 0 : index
    %c0_10 = arith.constant 0 : index
    %24 = vector.load %arg5[%c0_9, %c0_10] : memref<1x128xf32, #tpu.memory_space<vmem>>, vector<1x128xf32>
    %25 = vector.broadcast %24 : vector<1x128xf32> to vector<128x128xf32>
    %26 = arith.addf %23, %25 : vector<128x128xf32>
    %cst_11 = arith.constant 0.000000e+00 : f32
    %27 = vector.broadcast %cst_11 : f32 to vector<128x128xf32>
    %28 = arith.maximumf %26, %27 : vector<128x128xf32>
    %29 = arith.truncf %28 : vector<128x128xf32> to vector<128x128xbf16>
    %c0_12 = arith.constant 0 : index
    %c0_13 = arith.constant 0 : index
    %30 = vector.load %arg6[%c0_12, %c0_13] : memref<128x128xbf16, #tpu.memory_space<vmem>>, vector<128x128xbf16>
    %cst_14 = arith.constant dense<0.000000e+00> : vector<128x128xf32>
    %31 = tpu.matmul %29, %30, %cst_14 {dimension_numbers = #tpu.dot_dimension_numbers<[1], [0], [0], [1], [0, 0, 1, 1], [], []>} : vector<128x128xbf16>, vector<128x128xbf16>, vector<128x128xf32> -> vector<128x128xf32>
    %c0_15 = arith.constant 0 : index
    %c0_16 = arith.constant 0 : index
    %32 = vector.load %arg7[%c0_15, %c0_16] : memref<1x128xf32, #tpu.memory_space<vmem>>, vector<1x128xf32>
    %33 = vector.broadcast %32 : vector<1x128xf32> to vector<128x128xf32>
    %34 = arith.addf %31, %33 : vector<128x128xf32>
    %cst_17 = arith.constant 0.000000e+00 : f32
    %35 = vector.broadcast %cst_17 : f32 to vector<128x128xf32>
    %36 = arith.maximumf %34, %35 : vector<128x128xf32>
    %c0_18 = arith.constant 0 : index
    %c0_19 = arith.constant 0 : index
    %37 = vector.load %arg8[%c0_18, %c0_19] : memref<1x128xf32, #tpu.memory_space<vmem>>, vector<1x128xf32>
    %38 = vector.broadcast %37 : vector<1x128xf32> to vector<128x128xf32>
    %39 = arith.mulf %36, %38 : vector<128x128xf32>
    %cst_20 = arith.constant dense<0.000000e+00> : vector<128xf32>
    %40 = vector.multi_reduction <add>, %39, %cst_20 [1] : vector<128x128xf32> to vector<128xf32>
    %41 = vector.shape_cast %40 : vector<128xf32> to vector<128x1xf32>
    %c0_21 = arith.constant 0 : index
    %c0_22 = arith.constant 0 : index
    %42 = vector.load %arg9[%c0_21, %c0_22] : memref<1x1xf32, #tpu.memory_space<vmem>>, vector<1x1xf32>
    %43 = vector.broadcast %42 : vector<1x1xf32> to vector<128x1xf32>
    %44 = arith.addf %41, %43 : vector<128x1xf32>
    %45 = tpu.iota {dimensions = array<i32: 0>} : vector<128x1xi32>
    %c64_i32 = arith.constant 64 : i32
    %46 = vector.broadcast %c64_i32 : i32 to vector<128x1xi32>
    %47 = arith.cmpi slt, %45, %46 : vector<128x1xi32>
    %cst_23 = arith.constant 0.000000e+00 : f32
    %48 = vector.broadcast %cst_23 : f32 to vector<128x1xf32>
    %49 = arith.select %47, %44, %48 : vector<128x1xi1>, vector<128x1xf32>
    %50 = vector.shape_cast %49 : vector<128x1xf32> to vector<1x128x1xf32>
    %cst_24 = arith.constant dense<0.000000e+00> : vector<1xf32>
    %51 = vector.multi_reduction <add>, %50, %cst_24 [1, 2] : vector<1x128x1xf32> to vector<1xf32>
    %52 = vector.shape_cast %51 : vector<1xf32> to vector<1x1x1xf32>
    %53 = vector.extract %52[0, 0, 0] : f32 from vector<1x1x1xf32>
    %54 = vector.broadcast %53 : f32 to vector<1x1xf32>
    %cst_25 = arith.constant 0xFF800000 : f32
    %55 = vector.broadcast %cst_25 : f32 to vector<128x1xf32>
    %56 = arith.select %47, %55, %44 : vector<128x1xi1>, vector<128x1xf32>
    %57 = vector.shape_cast %56 : vector<128x1xf32> to vector<1x128x1xf32>
    %cst_26 = arith.constant dense<0xFF800000> : vector<1xf32>
    %58 = vector.multi_reduction <maximumf>, %57, %cst_26 [1, 2] : vector<1x128x1xf32> to vector<1xf32>
    %59 = vector.shape_cast %58 : vector<1xf32> to vector<1x1x1xf32>
    %60 = vector.extract %59[0, 0, 0] : f32 from vector<1x1x1xf32>
    %61 = vector.broadcast %60 : f32 to vector<1x1xf32>
    %62 = vector.broadcast %61 : vector<1x1xf32> to vector<128x1xf32>
    %63 = arith.subf %56, %62 : vector<128x1xf32>
    %64 = math.exp %63 : vector<128x1xf32>
    %65 = vector.shape_cast %64 : vector<128x1xf32> to vector<1x128x1xf32>
    %cst_27 = arith.constant dense<0.000000e+00> : vector<1xf32>
    %66 = vector.multi_reduction <add>, %65, %cst_27 [1, 2] : vector<1x128x1xf32> to vector<1xf32>
    %67 = vector.shape_cast %66 : vector<1xf32> to vector<1x1x1xf32>
    %68 = vector.extract %67[0, 0, 0] : f32 from vector<1x1x1xf32>
    %69 = vector.broadcast %68 : f32 to vector<1x1xf32>
    %cst_28 = arith.constant 1.562500e-02 : f32
    %70 = vector.broadcast %cst_28 : f32 to vector<1x1xf32>
    %71 = arith.mulf %54, %70 : vector<1x1xf32>
    %cst_29 = arith.constant 1.562500e-02 : f32
    %72 = vector.broadcast %cst_29 : f32 to vector<1x1xf32>
    %73 = arith.mulf %69, %72 : vector<1x1xf32>
    %74 = math.log %73 : vector<1x1xf32>
    %75 = arith.addf %61, %74 : vector<1x1xf32>
    %76 = arith.subf %71, %75 : vector<1x1xf32>
    %c0_30 = arith.constant 0 : index
    %c0_31 = arith.constant 0 : index
    %77 = vector.load %arg10[%c0_30, %c0_31] : memref<1x1xf32, #tpu.memory_space<vmem>>, vector<1x1xf32>
    tpu.vector_store %arg10[%c0_30, %c0_31], %76 {strides = array<i32>} : memref<1x1xf32, #tpu.memory_space<vmem>>, vector<1x1xf32>,
    return
  }
  func.func @transform_0(%arg0: i32) -> (i32, i32) {
    %c0_i32 = arith.constant 0 : i32
    %c0_i32_0 = arith.constant 0 : i32
    %c0_i32_1 = arith.constant 0 : i32
    return %c0_i32, %c0_i32_0 : i32, i32
  }
  func.func @transform_1(%arg0: i32) -> (i32, i32) {
    %c0_i32 = arith.constant 0 : i32
    %c0_i32_0 = arith.constant 0 : i32
    %c0_i32_1 = arith.constant 0 : i32
    return %c0_i32, %c0_i32_0 : i32, i32
  }
  func.func @transform_2(%arg0: i32) -> (i32, i32) {
    %c0_i32 = arith.constant 0 : i32
    %c0_i32_0 = arith.constant 0 : i32
    %c0_i32_1 = arith.constant 0 : i32
    return %c0_i32, %c0_i32_0 : i32, i32
  }
  func.func @transform_3(%arg0: i32) -> (i32, i32) {
    %c0_i32 = arith.constant 0 : i32
    %c0_i32_0 = arith.constant 0 : i32
    %c0_i32_1 = arith.constant 0 : i32
    return %c0_i32, %c0_i32_0 : i32, i32
  }
  func.func @transform_4(%arg0: i32) -> (i32, i32) {
    %c0_i32 = arith.constant 0 : i32
    %c0_i32_0 = arith.constant 0 : i32
    %c0_i32_1 = arith.constant 0 : i32
    return %c0_i32, %c0_i32_0 : i32, i32
  }
  func.func @transform_5(%arg0: i32) -> (i32, i32) {
    %c0_i32 = arith.constant 0 : i32
    %c0_i32_0 = arith.constant 0 : i32
    %c0_i32_1 = arith.constant 0 : i32
    return %c0_i32, %c0_i32_0 : i32, i32
  }
  func.func @transform_6(%arg0: i32) -> (i32, i32) {
    %c0_i32 = arith.constant 0 : i32
    %c0_i32_0 = arith.constant 0 : i32
    %c0_i32_1 = arith.constant 0 : i32
    return %c0_i32, %c0_i32_0 : i32, i32
  }
  func.func @transform_7(%arg0: i32) -> (i32, i32) {
    %c0_i32 = arith.constant 0 : i32
    %c0_i32_0 = arith.constant 0 : i32
    %c0_i32_1 = arith.constant 0 : i32
    return %c0_i32, %c0_i32_0 : i32, i32
  }
  func.func @transform_8(%arg0: i32) -> (i32, i32) {
    %c0_i32 = arith.constant 0 : i32
    %c0_i32_0 = arith.constant 0 : i32
    %c0_i32_1 = arith.constant 0 : i32
    return %c0_i32, %c0_i32_0 : i32, i32
  }
  func.func @transform_9(%arg0: i32) -> (i32, i32) {
    %c0_i32 = arith.constant 0 : i32
    %c0_i32_0 = arith.constant 0 : i32
    %c0_i32_1 = arith.constant 0 : i32
    return %c0_i32, %c0_i32_0 : i32, i32
  }
}

</mosaic_0001>

<llo_original>
// kernel: mine_forward.1
$region0: #{mine_forward.1}
  #allocation0 [shape = 'u32[]', space=smem, size = 0x4, offset = 0x4, fixed_abs, tag = 'smem constant byte address 0x4 - core index']
  #allocation1 [shape = 'u32[144,128]{1,0:T(1,128)}', space=vmem, size = 0x12000, scoped, tag = 'internal scratch']
  #allocation2 [shape = 'f32[1,1]{1,0:T(1,128)S(1)}', space=vmem, size = 0x200, scoped, tag = 'scoped memory for mine_forward.1']
  %s0 = inlined_call_operand.vmem [shape: s32[128,1], index: 0, kind: input, shape index: {}]
  %s1 = inlined_call_operand.vmem [shape: s32[128,1], index: 1, kind: input, shape index: {}]
  %s2 = inlined_call_operand.vmem [shape: f32[128,8], index: 2, kind: input, shape index: {}]
  %s3 = inlined_call_operand.vmem [shape: bf16[8,128], index: 3, kind: input, shape index: {}]
  %s4 = inlined_call_operand.vmem [shape: f32[1,128], index: 4, kind: input, shape index: {}]
  %s5 = inlined_call_operand.vmem [shape: bf16[128,128], index: 5, kind: input, shape index: {}]
  %s6 = inlined_call_operand.vmem [shape: f32[1,128], index: 6, kind: input, shape index: {}]
  %s7 = inlined_call_operand.vmem [shape: f32[1,128], index: 7, kind: input, shape index: {}]
  %s8 = inlined_call_operand.<no memory space> [shape: f32[1,1], index: 8, kind: input, shape index: {}]
  %s9 = inlined_call_operand.hbm [shape: f32[1,1], index: 9, kind: output, shape index: {}]
  %s10 = sld [smem:[#allocation0]]
  $region46: #{mine_forward.1} parent=0
    _
  %s12 = ssub.s32 1, %s10
  %s13 = scalar_select 0, %s12, %s10
  %v14 = vstv %s8
  %15 = vst [vmem:[#allocation2] sm:$0x1] %v14
  $region1: #{mine_forward.1} parent=0
    #allocation3 [shape = 'u8[512]{0}', space=vmem, size = 0x400, scoped, tag = 'output window, operand 0, single buffered']
    #allocation4 [shape = 's32[1]{0}', space=sflag, size = 0x4, scoped, tag = 'scoped memory for mine_forward.1']
    %16 = vsyncpa [#allocation4], 0
    // Predicated region
    $region2: #{mine_forward.1} parent=1 // pred_check
      _
    $region3: #{mine_forward.1} parent=1 // pred_check_branch
      %18 = sbr.rel (0) target = $region5
    $region4: #{mine_forward.1} parent=1 // pred_region
      _
    $region5: #{mine_forward.1} parent=1 // pred_fallthru
      _
    // Predicated region
    $region6: #{mine_forward.1} parent=1 // pred_check
      _
    $region7: #{mine_forward.1} parent=1 // pred_check_branch
      %20 = sbr.rel (0) target = $region9
    $region8: #{mine_forward.1} parent=1 // pred_region
      _
    $region9: #{mine_forward.1} parent=1 // pred_fallthru
      _
    // Predicated region
    $region10: #{mine_forward.1} parent=1 // pred_check
      _
    $region11: #{mine_forward.1} parent=1 // pred_check_branch
      %22 = sbr.rel (0) target = $region13
    $region12: #{mine_forward.1} parent=1 // pred_region
      _
    $region13: #{mine_forward.1} parent=1 // pred_fallthru
      _
    // Predicated region
    $region14: #{mine_forward.1} parent=1 // pred_check
      _
    $region15: #{mine_forward.1} parent=1 // pred_check_branch
      %24 = sbr.rel (0) target = $region17
    $region16: #{mine_forward.1} parent=1 // pred_region
      _
    $region17: #{mine_forward.1} parent=1 // pred_fallthru
      _
    // Predicated region
    $region18: #{mine_forward.1} parent=1 // pred_check
      _
    $region19: #{mine_forward.1} parent=1 // pred_check_branch
      %26 = sbr.rel (0) target = $region21
    $region20: #{mine_forward.1} parent=1 // pred_region
      _
    $region21: #{mine_forward.1} parent=1 // pred_fallthru
      _
    // Predicated region
    $region22: #{mine_forward.1} parent=1 // pred_check
      _
    $region23: #{mine_forward.1} parent=1 // pred_check_branch
      %28 = sbr.rel (0) target = $region25
    $region24: #{mine_forward.1} parent=1 // pred_region
      _
    $region25: #{mine_forward.1} parent=1 // pred_fallthru
      _
    // Predicated region
    $region26: #{mine_forward.1} parent=1 // pred_check
      _
    $region27: #{mine_forward.1} parent=1 // pred_check_branch
      %30 = sbr.rel (0) target = $region29
    $region28: #{mine_forward.1} parent=1 // pred_region
      _
    $region29: #{mine_forward.1} parent=1 // pred_fallthru
      _
    // Predicated region
    $region30: #{mine_forward.1} parent=1 // pred_check
      _
    $region31: #{mine_forward.1} parent=1 // pred_check_branch
      %32 = sbr.rel (0) target = $region33
    $region32: #{mine_forward.1} parent=1 // pred_region
      _
    $region33: #{mine_forward.1} parent=1 // pred_fallthru
      _
    // Predicated region
    $region34: #{mine_forward.1} parent=1 // pred_check
      _
    $region35: #{mine_forward.1} parent=1 // pred_check_branch
      %34 = sbr.rel (0) target = $region37
    $region36: #{mine_forward.1} parent=1 // pred_region
      _
    $region37: #{mine_forward.1} parent=1 // pred_fallthru
      _
    %v36 = vlaneseq
    %v37 = vand.u32 %v36, 127
    %v38 = vld [vmem:[%s0] sm:$0xff]
    %v39 = vld [vmem:[%s0 + $0x8] sm:$0xff]
    %v40 = vld [vmem:[%s0 + $0x10] sm:$0xff]
    %v41 = vld [vmem:[%s0 + $0x18] sm:$0xff]
    %v42 = vld [vmem:[%s0 + $0x20] sm:$0xff]
    %v43 = vld [vmem:[%s0 + $0x28] sm:$0xff]
    %v44 = vld [vmem:[%s0 + $0x30] sm:$0xff]
    %v45 = vld [vmem:[%s0 + $0x38] sm:$0xff]
    %v46 = vld [vmem:[%s0 + $0x40] sm:$0xff]
    %v47 = vld [vmem:[%s0 + $0x48] sm:$0xff]
    %v48 = vld [vmem:[%s0 + $0x50] sm:$0xff]
    %v49 = vld [vmem:[%s0 + $0x58] sm:$0xff]
    %v50 = vld [vmem:[%s0 + $0x60] sm:$0xff]
    %v51 = vld [vmem:[%s0 + $0x68] sm:$0xff]
    %v52 = vld [vmem:[%s0 + $0x70] sm:$0xff]
    %v53 = vld [vmem:[%s0 + $0x78] sm:$0xff]
    %54 = vset.pattern.permute.xlu0 0
    %55 = vperm.xlu0 %54, %v38
    %v56 = vpop.permute.xlu0 %55
    %57 = vset.pattern.permute.xlu0 0
    %58 = vperm.xlu0 %57, %v39
    %v59 = vpop.permute.xlu0 %58
    %60 = vset.pattern.permute.xlu0 0
    %61 = vperm.xlu0 %60, %v40
    %v62 = vpop.permute.xlu0 %61
    %63 = vset.pattern.permute.xlu0 0
    %64 = vperm.xlu0 %63, %v41
    %v65 = vpop.permute.xlu0 %64
    %66 = vset.pattern.permute.xlu0 0
    %67 = vperm.xlu0 %66, %v42
    %v68 = vpop.permute.xlu0 %67
    %69 = vset.pattern.permute.xlu0 0
    %70 = vperm.xlu0 %69, %v43
    %v71 = vpop.permute.xlu0 %70
    %72 = vset.pattern.permute.xlu0 0
    %73 = vperm.xlu0 %72, %v44
    %v74 = vpop.permute.xlu0 %73
    %75 = vset.pattern.permute.xlu0 0
    %76 = vperm.xlu0 %75, %v45
    %v77 = vpop.permute.xlu0 %76
    %78 = vset.pattern.permute.xlu0 0
    %79 = vperm.xlu0 %78, %v46
    %v80 = vpop.permute.xlu0 %79
    %81 = vset.pattern.permute.xlu0 0
    %82 = vperm.xlu0 %81, %v47
    %v83 = vpop.permute.xlu0 %82
    %84 = vset.pattern.permute.xlu0 0
    %85 = vperm.xlu0 %84, %v48
    %v86 = vpop.permute.xlu0 %85
    %87 = vset.pattern.permute.xlu0 0
    %88 = vperm.xlu0 %87, %v49
    %v89 = vpop.permute.xlu0 %88
    %90 = vset.pattern.permute.xlu0 0
    %91 = vperm.xlu0 %90, %v50
    %v92 = vpop.permute.xlu0 %91
    %93 = vset.pattern.permute.xlu0 0
    %94 = vperm.xlu0 %93, %v51
    %v95 = vpop.permute.xlu0 %94
    %96 = vset.pattern.permute.xlu0 0
    %97 = vperm.xlu0 %96, %v52
    %v98 = vpop.permute.xlu0 %97
    %99 = vset.pattern.permute.xlu0 0
    %100 = vperm.xlu0 %99, %v53
    %v101 = vpop.permute.xlu0 %100
    %vm102 = vcmp.eq.s32.totalorder %v37, %v56
    %vm103 = vcmp.eq.s32.totalorder %v37, %v59
    %vm104 = vcmp.eq.s32.totalorder %v37, %v62
    %vm105 = vcmp.eq.s32.totalorder %v37, %v65
    %vm106 = vcmp.eq.s32.totalorder %v37, %v68
    %vm107 = vcmp.eq.s32.totalorder %v37, %v71
    %vm108 = vcmp.eq.s32.totalorder %v37, %v74
    %vm109 = vcmp.eq.s32.totalorder %v37, %v77
    %vm110 = vcmp.eq.s32.totalorder %v37, %v80
    %vm111 = vcmp.eq.s32.totalorder %v37, %v83
    %vm112 = vcmp.eq.s32.totalorder %v37, %v86
    %vm113 = vcmp.eq.s32.totalorder %v37, %v89
    %vm114 = vcmp.eq.s32.totalorder %v37, %v92
    %vm115 = vcmp.eq.s32.totalorder %v37, %v95
    %vm116 = vcmp.eq.s32.totalorder %v37, %v98
    %vm117 = vcmp.eq.s32.totalorder %v37, %v101
    %v118 = vsel %vm102, 1, 0
    %v119 = vsel %vm103, 1, 0
    %v120 = vsel %vm104, 1, 0
    %v121 = vsel %vm105, 1, 0
    %v122 = vsel %vm106, 1, 0
    %v123 = vsel %vm107, 1, 0
    %v124 = vsel %vm108, 1, 0
    %v125 = vsel %vm109, 1, 0
    %v126 = vsel %vm110, 1, 0
    %v127 = vsel %vm111, 1, 0
    %v128 = vsel %vm112, 1, 0
    %v129 = vsel %vm113, 1, 0
    %v130 = vsel %vm114, 1, 0
    %v131 = vsel %vm115, 1, 0
    %v132 = vsel %vm116, 1, 0
    %v133 = vsel %vm117, 1, 0
    %v134 = vcvt.s32.f32 %v118
    %v135 = vcvt.s32.f32 %v119
    %v136 = vcvt.s32.f32 %v120
    %v137 = vcvt.s32.f32 %v121
    %v138 = vcvt.s32.f32 %v122
    %v139 = vcvt.s32.f32 %v123
    %v140 = vcvt.s32.f32 %v124
    %v141 = vcvt.s32.f32 %v125
    %v142 = vcvt.s32.f32 %v126
    %v143 = vcvt.s32.f32 %v127
    %v144 = vcvt.s32.f32 %v128
    %v145 = vcvt.s32.f32 %v129
    %v146 = vcvt.s32.f32 %v130
    %v147 = vcvt.s32.f32 %v131
    %v148 = vcvt.s32.f32 %v132
    %v149 = vcvt.s32.f32 %v133
    %v150 = vpack.c.bf16 %v135, %v134
    %v151 = vpack.c.bf16 %v137, %v136
    %v152 = vpack.c.bf16 %v139, %v138
    %v153 = vpack.c.bf16 %v141, %v140
    %v154 = vpack.c.bf16 %v143, %v142
    %v155 = vpack.c.bf16 %v145, %v144
    %v156 = vpack.c.bf16 %v147, %v146
    %v157 = vpack.c.bf16 %v149, %v148
    %v158 = vld [vmem:[%s1] sm:$0xff]
    %v159 = vld [vmem:[%s1 + $0x8] sm:$0xff]
    %v160 = vld [vmem:[%s1 + $0x10] sm:$0xff]
    %v161 = vld [vmem:[%s1 + $0x18] sm:$0xff]
    %v162 = vld [vmem:[%s1 + $0x20] sm:$0xff]
    %v163 = vld [vmem:[%s1 + $0x28] sm:$0xff]
    %v164 = vld [vmem:[%s1 + $0x30] sm:$0xff]
    %v165 = vld [vmem:[%s1 + $0x38] sm:$0xff]
    %v166 = vld [vmem:[%s1 + $0x40] sm:$0xff]
    %v167 = vld [vmem:[%s1 + $0x48] sm:$0xff]
    %v168 = vld [vmem:[%s1 + $0x50] sm:$0xff]
    %v169 = vld [vmem:[%s1 + $0x58] sm:$0xff]
    %v170 = vld [vmem:[%s1 + $0x60] sm:$0xff]
    %v171 = vld [vmem:[%s1 + $0x68] sm:$0xff]
    %v172 = vld [vmem:[%s1 + $0x70] sm:$0xff]
    %v173 = vld [vmem:[%s1 + $0x78] sm:$0xff]
    %174 = vset.pattern.permute.xlu0 0
    %175 = vperm.xlu0 %174, %v158
    %v176 = vpop.permute.xlu0 %175
    %177 = vset.pattern.permute.xlu0 0
    %178 = vperm.xlu0 %177, %v159
    %v179 = vpop.permute.xlu0 %178
    %180 = vset.pattern.permute.xlu0 0
    %181 = vperm.xlu0 %180, %v160
    %v182 = vpop.permute.xlu0 %181
    %183 = vset.pattern.permute.xlu0 0
    %184 = vperm.xlu0 %183, %v161
    %v185 = vpop.permute.xlu0 %184
    %186 = vset.pattern.permute.xlu0 0
    %187 = vperm.xlu0 %186, %v162
    %v188 = vpop.permute.xlu0 %187
    %189 = vset.pattern.permute.xlu0 0
    %190 = vperm.xlu0 %189, %v163
    %v191 = vpop.permute.xlu0 %190
    %192 = vset.pattern.permute.xlu0 0
    %193 = vperm.xlu0 %192, %v164
    %v194 = vpop.permute.xlu0 %193
    %195 = vset.pattern.permute.xlu0 0
    %196 = vperm.xlu0 %195, %v165
    %v197 = vpop.permute.xlu0 %196
    %198 = vset.pattern.permute.xlu0 0
    %199 = vperm.xlu0 %198, %v166
    %v200 = vpop.permute.xlu0 %199
    %201 = vset.pattern.permute.xlu0 0
    %202 = vperm.xlu0 %201, %v167
    %v203 = vpop.permute.xlu0 %202
    %204 = vset.pattern.permute.xlu0 0
    %205 = vperm.xlu0 %204, %v168
    %v206 = vpop.permute.xlu0 %205
    %207 = vset.pattern.permute.xlu0 0
    %208 = vperm.xlu0 %207, %v169
    %v209 = vpop.permute.xlu0 %208
    %210 = vset.pattern.permute.xlu0 0
    %211 = vperm.xlu0 %210, %v170
    %v212 = vpop.permute.xlu0 %211
    %213 = vset.pattern.permute.xlu0 0
    %214 = vperm.xlu0 %213, %v171
    %v215 = vpop.permute.xlu0 %214
    %216 = vset.pattern.permute.xlu0 0
    %217 = vperm.xlu0 %216, %v172
    %v218 = vpop.permute.xlu0 %217
    %219 = vset.pattern.permute.xlu0 0
    %220 = vperm.xlu0 %219, %v173
    %v221 = vpop.permute.xlu0 %220
    %vm222 = vcmp.eq.s32.totalorder %v37, %v176
    %vm223 = vcmp.eq.s32.totalorder %v37, %v179
    %vm224 = vcmp.eq.s32.totalorder %v37, %v182
    %vm225 = vcmp.eq.s32.totalorder %v37, %v185
    %vm226 = vcmp.eq.s32.totalorder %v37, %v188
    %vm227 = vcmp.eq.s32.totalorder %v37, %v191
    %vm228 = vcmp.eq.s32.totalorder %v37, %v194
    %vm229 = vcmp.eq.s32.totalorder %v37, %v197
    %vm230 = vcmp.eq.s32.totalorder %v37, %v200
    %vm231 = vcmp.eq.s32.totalorder %v37, %v203
    %vm232 = vcmp.eq.s32.totalorder %v37, %v206
    %vm233 = vcmp.eq.s32.totalorder %v37, %v209
    %vm234 = vcmp.eq.s32.totalorder %v37, %v212
    %vm235 = vcmp.eq.s32.totalorder %v37, %v215
    %vm236 = vcmp.eq.s32.totalorder %v37, %v218
    %vm237 = vcmp.eq.s32.totalorder %v37, %v221
    %v238 = vsel %vm222, 1, 0
    %v239 = vsel %vm223, 1, 0
    %v240 = vsel %vm224, 1, 0
    %v241 = vsel %vm225, 1, 0
    %v242 = vsel %vm226, 1, 0
    %v243 = vsel %vm227, 1, 0
    %v244 = vsel %vm228, 1, 0
    %v245 = vsel %vm229, 1, 0
    %v246 = vsel %vm230, 1, 0
    %v247 = vsel %vm231, 1, 0
    %v248 = vsel %vm232, 1, 0
    %v249 = vsel %vm233, 1, 0
    %v250 = vsel %vm234, 1, 0
    %v251 = vsel %vm235, 1, 0
    %v252 = vsel %vm236, 1, 0
    %v253 = vsel %vm237, 1, 0
    %v254 = vcvt.s32.f32 %v238
    %v255 = vcvt.s32.f32 %v239
    %v256 = vcvt.s32.f32 %v240
    %v257 = vcvt.s32.f32 %v241
    %v258 = vcvt.s32.f32 %v242
    %v259 = vcvt.s32.f32 %v243
    %v260 = vcvt.s32.f32 %v244
    %v261 = vcvt.s32.f32 %v245
    %v262 = vcvt.s32.f32 %v246
    %v263 = vcvt.s32.f32 %v247
    %v264 = vcvt.s32.f32 %v248
    %v265 = vcvt.s32.f32 %v249
    %v266 = vcvt.s32.f32 %v250
    %v267 = vcvt.s32.f32 %v251
    %v268 = vcvt.s32.f32 %v252
    %v269 = vcvt.s32.f32 %v253
    %v270 = vpack.c.bf16 %v255, %v254
    %v271 = vpack.c.bf16 %v257, %v256
    %v272 = vpack.c.bf16 %v259, %v258
    %v273 = vpack.c.bf16 %v261, %v260
    %v274 = vpack.c.bf16 %v263, %v262
    %v275 = vpack.c.bf16 %v265, %v264
    %v276 = vpack.c.bf16 %v267, %v266
    %v277 = vpack.c.bf16 %v269, %v268
    %v278 = vld [vmem:[%s2] sm:$0xff]
    %v279 = vld [vmem:[%s2 + $0x8] sm:$0xff]
    %v280 = vld [vmem:[%s2 + $0x10] sm:$0xff]
    %v281 = vld [vmem:[%s2 + $0x18] sm:$0xff]
    %v282 = vld [vmem:[%s2 + $0x20] sm:$0xff]
    %v283 = vld [vmem:[%s2 + $0x28] sm:$0xff]
    %v284 = vld [vmem:[%s2 + $0x30] sm:$0xff]
    %v285 = vld [vmem:[%s2 + $0x38] sm:$0xff]
    %v286 = vld [vmem:[%s2 + $0x40] sm:$0xff]
    %v287 = vld [vmem:[%s2 + $0x48] sm:$0xff]
    %v288 = vld [vmem:[%s2 + $0x50] sm:$0xff]
    %v289 = vld [vmem:[%s2 + $0x58] sm:$0xff]
    %v290 = vld [vmem:[%s2 + $0x60] sm:$0xff]
    %v291 = vld [vmem:[%s2 + $0x68] sm:$0xff]
    %v292 = vld [vmem:[%s2 + $0x70] sm:$0xff]
    %v293 = vld [vmem:[%s2 + $0x78] sm:$0xff]
    %v294 = vpack.c.bf16 %v279, %v278
    %v295 = vpack.c.bf16 %v281, %v280
    %v296 = vpack.c.bf16 %v283, %v282
    %v297 = vpack.c.bf16 %v285, %v284
    %v298 = vpack.c.bf16 %v287, %v286
    %v299 = vpack.c.bf16 %v289, %v288
    %v300 = vpack.c.bf16 %v291, %v290
    %v301 = vpack.c.bf16 %v293, %v292
    %302 = vmatprep.subr.bf16.mxu0 0
    %303 = vmatpush1.bf16.msra.mxu0 %v294
    %304 = vmatprep.subr.bf16.mxu0 0
    %305 = vmatpush1.bf16.msra.mxu0 %v295
    %306 = vmatprep.subr.bf16.mxu0 0
    %307 = vmatpush1.bf16.msra.mxu0 %v296
    %308 = vmatprep.subr.bf16.mxu0 0
    %309 = vmatpush1.bf16.msra.mxu0 %v297
    %310 = vmatprep.subr.bf16.mxu0 0
    %311 = vmatpush1.bf16.msra.mxu0 %v298
    %312 = vmatprep.subr.bf16.mxu0 0
    %313 = vmatpush1.bf16.msra.mxu0 %v299
    %314 = vmatprep.subr.bf16.mxu0 0
    %315 = vmatpush1.bf16.msra.mxu0 %v300
    %316 = vmatprep.subr.bf16.mxu0 0
    %317 = vmatpush1.bf16.msra.mxu0 %v301
    %318 = vmatprep.subr.bf16.mxu0 0
    %319 = vmatpush1.bf16.msra.mxu0 0
    %320 = vmatprep.subr.bf16.mxu0 0
    %321 = vmatpush1.bf16.msra.mxu0 0
    %322 = vmatprep.subr.bf16.mxu0 0
    %323 = vmatpush1.bf16.msra.mxu0 0
    %324 = vmatprep.subr.bf16.mxu0 0
    %325 = vmatpush1.bf16.msra.mxu0 0
    %326 = vmatprep.subr.bf16.mxu0 0
    %327 = vmatpush1.bf16.msra.mxu0 0
    %328 = vmatprep.subr.bf16.mxu0 0
    %329 = vmatpush1.bf16.msra.mxu0 0
    %330 = vmatprep.subr.bf16.mxu0 0
    %331 = vmatpush1.bf16.msra.mxu0 0
    %332 = vmatprep.subr.bf16.mxu0 0
    %333 = vmatpush1.bf16.msra.mxu0 0
    %334 = vmatprep.mubr.bf16.mxu0 0
    %335 = vmatmul.mubr.bf16.gmra.mrb[0].mxu0 %v150
    %v336 = vpop.f32.mrb[0].mxu0
    %v337 = vadd.f32 0.0, %v336
    %v338 = vpop.f32.mrb[0].mxu0
    %v339 = vpop.f32.mrb[0].mxu0
    %v340 = vadd.f32 0.0, %v339
    %v341 = vpop.f32.mrb[0].mxu0
    %342 = vmatprep.mubr.bf16.mxu0 0
    %343 = vmatmul.mubr.bf16.gmra.mrb[0].mxu0 %v151
    %v344 = vpop.f32.mrb[0].mxu0
    %v345 = vadd.f32 0.0, %v344
    %v346 = vpop.f32.mrb[0].mxu0
    %v347 = vpop.f32.mrb[0].mxu0
    %v348 = vadd.f32 0.0, %v347
    %v349 = vpop.f32.mrb[0].mxu0
    %350 = vmatprep.mubr.bf16.mxu0 0
    %351 = vmatmul.mubr.bf16.gmra.mrb[0].mxu0 %v152
    %v352 = vpop.f32.mrb[0].mxu0
    %v353 = vadd.f32 0.0, %v352
    %v354 = vpop.f32.mrb[0].mxu0
    %v355 = vpop.f32.mrb[0].mxu0
    %v356 = vadd.f32 0.0, %v355
    %v357 = vpop.f32.mrb[0].mxu0
    %358 = vmatprep.mubr.bf16.mxu0 0
    %359 = vmatmul.mubr.bf16.gmra.mrb[0].mxu0 %v153
    %v360 = vpop.f32.mrb[0].mxu0
    %v361 = vadd.f32 0.0, %v360
    %v362 = vpop.f32.mrb[0].mxu0
    %v363 = vpop.f32.mrb[0].mxu0
    %v364 = vadd.f32 0.0, %v363
    %v365 = vpop.f32.mrb[0].mxu0
    %366 = vmatprep.mubr.bf16.mxu0 0
    %367 = vmatmul.mubr.bf16.gmra.mrb[0].mxu0 %v154
    %v368 = vpop.f32.mrb[0].mxu0
    %v369 = vadd.f32 0.0, %v368
    %v370 = vpop.f32.mrb[0].mxu0
    %v371 = vpop.f32.mrb[0].mxu0
    %v372 = vadd.f32 0.0, %v371
    %v373 = vpop.f32.mrb[0].mxu0
    %374 = vmatprep.mubr.bf16.mxu0 0
    %375 = vmatmul.mubr.bf16.gmra.mrb[0].mxu0 %v155
    %v376 = vpop.f32.mrb[0].mxu0
    %v377 = vadd.f32 0.0, %v376
    %v378 = vpop.f32.mrb[0].mxu0
    %v379 = vpop.f32.mrb[0].mxu0
    %v380 = vadd.f32 0.0, %v379
    %v381 = vpop.f32.mrb[0].mxu0
    %382 = vmatprep.mubr.bf16.mxu0 0
    %383 = vmatmul.mubr.bf16.gmra.mrb[0].mxu0 %v156
    %v384 = vpop.f32.mrb[0].mxu0
    %v385 = vadd.f32 0.0, %v384
    %v386 = vpop.f32.mrb[0].mxu0
    %v387 = vpop.f32.mrb[0].mxu0
    %v388 = vadd.f32 0.0, %v387
    %v389 = vpop.f32.mrb[0].mxu0
    %390 = vmatprep.mubr.bf16.mxu0 0
    %391 = vmatmul.mubr.bf16.gmra.mrb[0].mxu0 %v157
    %v392 = vpop.f32.mrb[0].mxu0
    %v393 = vadd.f32 0.0, %v392
    %v394 = vpop.f32.mrb[0].mxu0
    %v395 = vpop.f32.mrb[0].mxu0
    %v396 = vadd.f32 0.0, %v395
    %v397 = vpop.f32.mrb[0].mxu0
    %398 = vdwg.mxu0
    %399 = vmatprep.subr.bf16.mxu0 0
    %400 = vmatpush1.bf16.msra.mxu0 %v294
    %401 = vmatprep.subr.bf16.mxu0 0
    %402 = vmatpush1.bf16.msra.mxu0 %v295
    %403 = vmatprep.subr.bf16.mxu0 0
    %404 = vmatpush1.bf16.msra.mxu0 %v296
    %405 = vmatprep.subr.bf16.mxu0 0
    %406 = vmatpush1.bf16.msra.mxu0 %v297
    %407 = vmatprep.subr.bf16.mxu0 0
    %408 = vmatpush1.bf16.msra.mxu0 %v298
    %409 = vmatprep.subr.bf16.mxu0 0
    %410 = vmatpush1.bf16.msra.mxu0 %v299
    %411 = vmatprep.subr.bf16.mxu0 0
    %412 = vmatpush1.bf16.msra.mxu0 %v300
    %413 = vmatprep.subr.bf16.mxu0 0
    %414 = vmatpush1.bf16.msra.mxu0 %v301
    %415 = vmatprep.subr.bf16.mxu0 0
    %416 = vmatpush1.bf16.msra.mxu0 0
    %417 = vmatprep.subr.bf16.mxu0 0
    %418 = vmatpush1.bf16.msra.mxu0 0
    %419 = vmatprep.subr.bf16.mxu0 0
    %420 = vmatpush1.bf16.msra.mxu0 0
    %421 = vmatprep.subr.bf16.mxu0 0
    %422 = vmatpush1.bf16.msra.mxu0 0
    %423 = vmatprep.subr.bf16.mxu0 0
    %424 = vmatpush1.bf16.msra.mxu0 0
    %425 = vmatprep.subr.bf16.mxu0 0
    %426 = vmatpush1.bf16.msra.mxu0 0
    %427 = vmatprep.subr.bf16.mxu0 0
    %428 = vmatpush1.bf16.msra.mxu0 0
    %429 = vmatprep.subr.bf16.mxu0 0
    %430 = vmatpush1.bf16.msra.mxu0 0
    %431 = vmatprep.mubr.bf16.mxu0 0
    %432 = vmatmul.mubr.bf16.gmra.mrb[0].mxu0 %v270
    %v433 = vpop.f32.mrb[0].mxu0
    %v434 = vadd.f32 0.0, %v433
    %v435 = vpop.f32.mrb[0].mxu0
    %v436 = vpop.f32.mrb[0].mxu0
    %v437 = vadd.f32 0.0, %v436
    %v438 = vpop.f32.mrb[0].mxu0
    %439 = vmatprep.mubr.bf16.mxu0 0
    %440 = vmatmul.mubr.bf16.gmra.mrb[0].mxu0 %v271
    %v441 = vpop.f32.mrb[0].mxu0
    %v442 = vadd.f32 0.0, %v441
    %v443 = vpop.f32.mrb[0].mxu0
    %v444 = vpop.f32.mrb[0].mxu0
    %v445 = vadd.f32 0.0, %v444
    %v446 = vpop.f32.mrb[0].mxu0
    %447 = vmatprep.mubr.bf16.mxu0 0
    %448 = vmatmul.mubr.bf16.gmra.mrb[0].mxu0 %v272
    %v449 = vpop.f32.mrb[0].mxu0
    %v450 = vadd.f32 0.0, %v449
    %v451 = vpop.f32.mrb[0].mxu0
    %v452 = vpop.f32.mrb[0].mxu0
    %v453 = vadd.f32 0.0, %v452
    %v454 = vpop.f32.mrb[0].mxu0
    %455 = vmatprep.mubr.bf16.mxu0 0
    %456 = vmatmul.mubr.bf16.gmra.mrb[0].mxu0 %v273
    %v457 = vpop.f32.mrb[0].mxu0
    %v458 = vadd.f32 0.0, %v457
    %v459 = vpop.f32.mrb[0].mxu0
    %v460 = vpop.f32.mrb[0].mxu0
    %v461 = vadd.f32 0.0, %v460
    %v462 = vpop.f32.mrb[0].mxu0
    %463 = vmatprep.mubr.bf16.mxu0 0
    %464 = vmatmul.mubr.bf16.gmra.mrb[0].mxu0 %v274
    %v465 = vpop.f32.mrb[0].mxu0
    %v466 = vadd.f32 0.0, %v465
    %v467 = vpop.f32.mrb[0].mxu0
    %v468 = vpop.f32.mrb[0].mxu0
    %v469 = vadd.f32 0.0, %v468
    %v470 = vpop.f32.mrb[0].mxu0
    %471 = vmatprep.mubr.bf16.mxu0 0
    %472 = vmatmul.mubr.bf16.gmra.mrb[0].mxu0 %v275
    %v473 = vpop.f32.mrb[0].mxu0
    %v474 = vadd.f32 0.0, %v473
    %v475 = vpop.f32.mrb[0].mxu0
    %v476 = vpop.f32.mrb[0].mxu0
    %v477 = vadd.f32 0.0, %v476
    %v478 = vpop.f32.mrb[0].mxu0
    %479 = vmatprep.mubr.bf16.mxu0 0
    %480 = vmatmul.mubr.bf16.gmra.mrb[0].mxu0 %v276
    %v481 = vpop.f32.mrb[0].mxu0
    %v482 = vadd.f32 0.0, %v481
    %v483 = vpop.f32.mrb[0].mxu0
    %v484 = vpop.f32.mrb[0].mxu0
    %v485 = vadd.f32 0.0, %v484
    %v486 = vpop.f32.mrb[0].mxu0
    %487 = vmatprep.mubr.bf16.mxu0 0
    %488 = vmatmul.mubr.bf16.gmra.mrb[0].mxu0 %v277
    %v489 = vpop.f32.mrb[0].mxu0
    %v490 = vadd.f32 0.0, %v489
    %v491 = vpop.f32.mrb[0].mxu0
    %v492 = vpop.f32.mrb[0].mxu0
    %v493 = vadd.f32 0.0, %v492
    %v494 = vpop.f32.mrb[0].mxu0
    %495 = vdwg.mxu0
    %vm496 = vcmp.lt.s32.totalorder %v37, 4
    %v497 = vsel %vm496, %v337, %v434
    %v498 = vsel %vm496, %v340, %v437
    %v499 = vsel %vm496, %v345, %v442
    %v500 = vsel %vm496, %v348, %v445
    %v501 = vsel %vm496, %v353, %v450
    %v502 = vsel %vm496, %v356, %v453
    %v503 = vsel %vm496, %v361, %v458
    %v504 = vsel %vm496, %v364, %v461
    %v505 = vsel %vm496, %v369, %v466
    %v506 = vsel %vm496, %v372, %v469
    %v507 = vsel %vm496, %v377, %v474
    %v508 = vsel %vm496, %v380, %v477
    %v509 = vsel %vm496, %v385, %v482
    %v510 = vsel %vm496, %v388, %v485
    %v511 = vsel %vm496, %v393, %v490
    %v512 = vsel %vm496, %v396, %v493
    %v513 = vpack.c.bf16 %v498, %v497
    %v514 = vpack.c.bf16 %v500, %v499
    %v515 = vpack.c.bf16 %v502, %v501
    %v516 = vpack.c.bf16 %v504, %v503
    %v517 = vpack.c.bf16 %v506, %v505
    %v518 = vpack.c.bf16 %v508, %v507
    %v519 = vpack.c.bf16 %v510, %v509
    %v520 = vpack.c.bf16 %v512, %v511
    %v521 = vld [vmem:[%s3] sm:$0xf]
    %v522 = vld [vmem:[%s4] sm:$0x1]
    %v524 = vlaneseq
    %v525 = vshrl.u32 %v524, 7
    %v526 = vsub.s32 0, %v525
    %v527 = vrot.slane %v522, %v526
    %vm529 = vcmask 64512
    %v531 = vsel %vm529, %v513, 0
    %v534 = vsel %vm529, %v514, 0
    %v537 = vsel %vm529, %v515, 0
    %v540 = vsel %vm529, %v516, 0
    %v543 = vsel %vm529, %v517, 0
    %v546 = vsel %vm529, %v518, 0
    %v549 = vsel %vm529, %v519, 0
    %v552 = vsel %vm529, %v520, 0
    %vm554 = vcmask 1043456
    %v556 = vsel %vm554, %v521, 0
    %558 = vmatprep.subr.bf16.mxu0 0
    %559 = vmatpush1.bf16.msra.mxu0 %v556
    %560 = vmatprep.subr.bf16.mxu0 0
    %561 = vmatpush1.bf16.msra.mxu0 0
    %562 = vmatprep.subr.bf16.mxu0 0
    %563 = vmatpush1.bf16.msra.mxu0 0
    %564 = vmatprep.subr.bf16.mxu0 0
    %565 = vmatpush1.bf16.msra.mxu0 0
    %566 = vmatprep.subr.bf16.mxu0 0
    %567 = vmatpush1.bf16.msra.mxu0 0
    %568 = vmatprep.subr.bf16.mxu0 0
    %569 = vmatpush1.bf16.msra.mxu0 0
    %570 = vmatprep.subr.bf16.mxu0 0
    %571 = vmatpush1.bf16.msra.mxu0 0
    %572 = vmatprep.subr.bf16.mxu0 0
    %573 = vmatpush1.bf16.msra.mxu0 0
    %574 = vmatprep.subr.bf16.mxu0 0
    %575 = vmatpush1.bf16.msra.mxu0 0
    %576 = vmatprep.subr.bf16.mxu0 0
    %577 = vmatpush1.bf16.msra.mxu0 0
    %578 = vmatprep.subr.bf16.mxu0 0
    %579 = vmatpush1.bf16.msra.mxu0 0
    %580 = vmatprep.subr.bf16.mxu0 0
    %581 = vmatpush1.bf16.msra.mxu0 0
    %582 = vmatprep.subr.bf16.mxu0 0
    %583 = vmatpush1.bf16.msra.mxu0 0
    %584 = vmatprep.subr.bf16.mxu0 0
    %585 = vmatpush1.bf16.msra.mxu0 0
    %586 = vmatprep.subr.bf16.mxu0 0
    %587 = vmatpush1.bf16.msra.mxu0 0
    %588 = vmatprep.subr.bf16.mxu0 0
    %589 = vmatpush1.bf16.msra.mxu0 0
    %590 = vmatprep.mubr.bf16.mxu0 0
    %591 = vmatmul.mubr.bf16.gmra.mrb[0].mxu0 %v531
    %v592 = vpop.f32.mrb[0].mxu0
    %v593 = vadd.f32 %v527, %v592
    %v594 = vpop.f32.mrb[0].mxu0
    %v595 = vpop.f32.mrb[0].mxu0
    %v596 = vadd.f32 %v527, %v595
    %v597 = vpop.f32.mrb[0].mxu0
    %598 = vmatprep.mubr.bf16.mxu0 0
    %599 = vmatmul.mubr.bf16.gmra.mrb[0].mxu0 %v534
    %v600 = vpop.f32.mrb[0].mxu0
    %v601 = vadd.f32 %v527, %v600
    %v602 = vpop.f32.mrb[0].mxu0
    %v603 = vpop.f32.mrb[0].mxu0
    %v604 = vadd.f32 %v527, %v603
    %v605 = vpop.f32.mrb[0].mxu0
    %606 = vmatprep.mubr.bf16.mxu0 0
    %607 = vmatmul.mubr.bf16.gmra.mrb[0].mxu0 %v537
    %v608 = vpop.f32.mrb[0].mxu0
    %v609 = vadd.f32 %v527, %v608
    %v610 = vpop.f32.mrb[0].mxu0
    %v611 = vpop.f32.mrb[0].mxu0
    %v612 = vadd.f32 %v527, %v611
    %v613 = vpop.f32.mrb[0].mxu0
    %614 = vmatprep.mubr.bf16.mxu0 0
    %615 = vmatmul.mubr.bf16.gmra.mrb[0].mxu0 %v540
    %v616 = vpop.f32.mrb[0].mxu0
    %v617 = vadd.f32 %v527, %v616
    %v618 = vpop.f32.mrb[0].mxu0
    %v619 = vpop.f32.mrb[0].mxu0
    %v620 = vadd.f32 %v527, %v619
    %v621 = vpop.f32.mrb[0].mxu0
    %622 = vmatprep.mubr.bf16.mxu0 0
    %623 = vmatmul.mubr.bf16.gmra.mrb[0].mxu0 %v543
    %v624 = vpop.f32.mrb[0].mxu0
    %v625 = vadd.f32 %v527, %v624
    %v626 = vpop.f32.mrb[0].mxu0
    %v627 = vpop.f32.mrb[0].mxu0
    %v628 = vadd.f32 %v527, %v627
    %v629 = vpop.f32.mrb[0].mxu0
    %630 = vmatprep.mubr.bf16.mxu0 0
    %631 = vmatmul.mubr.bf16.gmra.mrb[0].mxu0 %v546
    %v632 = vpop.f32.mrb[0].mxu0
    %v633 = vadd.f32 %v527, %v632
    %v634 = vpop.f32.mrb[0].mxu0
    %v635 = vpop.f32.mrb[0].mxu0
    %v636 = vadd.f32 %v527, %v635
    %v637 = vpop.f32.mrb[0].mxu0
    %638 = vmatprep.mubr.bf16.mxu0 0
    %639 = vmatmul.mubr.bf16.gmra.mrb[0].mxu0 %v549
    %v640 = vpop.f32.mrb[0].mxu0
    %v641 = vadd.f32 %v527, %v640
    %v642 = vpop.f32.mrb[0].mxu0
    %v643 = vpop.f32.mrb[0].mxu0
    %v644 = vadd.f32 %v527, %v643
    %v645 = vpop.f32.mrb[0].mxu0
    %646 = vmatprep.mubr.bf16.mxu0 0
    %647 = vmatmul.mubr.bf16.gmra.mrb[0].mxu0 %v552
    %v648 = vpop.f32.mrb[0].mxu0
    %v649 = vadd.f32 %v527, %v648
    %v650 = vpop.f32.mrb[0].mxu0
    %v651 = vpop.f32.mrb[0].mxu0
    %v652 = vadd.f32 %v527, %v651
    %v653 = vpop.f32.mrb[0].mxu0
    %654 = vdwg.mxu0
    %v655 = vmax.f32 %v593, 0.0
    %v656 = vmax.f32 %v596, 0.0
    %v657 = vmax.f32 %v601, 0.0
    %v658 = vmax.f32 %v604, 0.0
    %v659 = vmax.f32 %v609, 0.0
    %v660 = vmax.f32 %v612, 0.0
    %v661 = vmax.f32 %v617, 0.0
    %v662 = vmax.f32 %v620, 0.0
    %v663 = vmax.f32 %v625, 0.0
    %v664 = vmax.f32 %v628, 0.0
    %v665 = vmax.f32 %v633, 0.0
    %v666 = vmax.f32 %v636, 0.0
    %v667 = vmax.f32 %v641, 0.0
    %v668 = vmax.f32 %v644, 0.0
    %v669 = vmax.f32 %v649, 0.0
    %v670 = vmax.f32 %v652, 0.0
    %v671 = vpack.c.bf16 %v656, %v655
    %v672 = vpack.c.bf16 %v658, %v657
    %v673 = vpack.c.bf16 %v660, %v659
    %v674 = vpack.c.bf16 %v662, %v661
    %v675 = vpack.c.bf16 %v664, %v663
    %v676 = vpack.c.bf16 %v666, %v665
    %v677 = vpack.c.bf16 %v668, %v667
    %v678 = vpack.c.bf16 %v670, %v669
    %v679 = vld [vmem:[%s5] sm:$0xf]
    %v680 = vld [vmem:[%s5 + $0x4] sm:$0xf]
    %v681 = vld [vmem:[%s5 + $0x8] sm:$0xf]
    %v682 = vld [vmem:[%s5 + $0xc] sm:$0xf]
    %v683 = vld [vmem:[%s5 + $0x10] sm:$0xf]
    %v684 = vld [vmem:[%s5 + $0x14] sm:$0xf]
    %v685 = vld [vmem:[%s5 + $0x18] sm:$0xf]
    %v686 = vld [vmem:[%s5 + $0x1c] sm:$0xf]
    %v687 = vld [vmem:[%s5 + $0x20] sm:$0xf]
    %v688 = vld [vmem:[%s5 + $0x24] sm:$0xf]
    %v689 = vld [vmem:[%s5 + $0x28] sm:$0xf]
    %v690 = vld [vmem:[%s5 + $0x2c] sm:$0xf]
    %v691 = vld [vmem:[%s5 + $0x30] sm:$0xf]
    %v692 = vld [vmem:[%s5 + $0x34] sm:$0xf]
    %v693 = vld [vmem:[%s5 + $0x38] sm:$0xf]
    %v694 = vld [vmem:[%s5 + $0x3c] sm:$0xf]
    %v695 = vld [vmem:[%s6] sm:$0x1]
    %v697 = vlaneseq
    %v698 = vshrl.u32 %v697, 7
    %v699 = vsub.s32 0, %v698
    %v700 = vrot.slane %v695, %v699
    %v718 = vunpack.c.l.b16 %v679
    %v719 = vunpack.c.l.b16 %v680
    %v720 = vunpack.c.l.b16 %v681
    %v721 = vunpack.c.l.b16 %v682
    %v722 = vunpack.c.l.b16 %v683
    %v723 = vunpack.c.l.b16 %v684
    %v724 = vunpack.c.l.b16 %v685
    %v725 = vunpack.c.l.b16 %v686
    %v726 = vunpack.c.l.b16 %v687
    %v727 = vunpack.c.l.b16 %v688
    %v728 = vunpack.c.l.b16 %v689
    %v729 = vunpack.c.l.b16 %v690
    %v730 = vunpack.c.l.b16 %v691
    %v731 = vunpack.c.l.b16 %v692
    %v732 = vunpack.c.l.b16 %v693
    %v733 = vunpack.c.l.b16 %v694
    %v734 = vpack.c.b16 %v719, %v718
    %v735 = vpack.c.b16 %v721, %v720
    %v736 = vpack.c.b16 %v723, %v722
    %v737 = vpack.c.b16 %v725, %v724
    %v738 = vpack.c.b16 %v727, %v726
    %v739 = vpack.c.b16 %v729, %v728
    %v740 = vpack.c.b16 %v731, %v730
    %v741 = vpack.c.b16 %v733, %v732
    %750 = vmatprep.subr.bf16.mxu0 0
    %751 = vmatpush1.bf16.msra.mxu0 %v734
    %752 = vmatprep.subr.bf16.mxu0 0
    %753 = vmatpush1.bf16.msra.mxu0 %v735
    %754 = vmatprep.subr.bf16.mxu0 0
    %755 = vmatpush1.bf16.msra.mxu0 %v736
    %756 = vmatprep.subr.bf16.mxu0 0
    %757 = vmatpush1.bf16.msra.mxu0 %v737
    %758 = vmatprep.subr.bf16.mxu0 0
    %759 = vmatpush1.bf16.msra.mxu0 %v738
    %760 = vmatprep.subr.bf16.mxu0 0
    %761 = vmatpush1.bf16.msra.mxu0 %v739
    %762 = vmatprep.subr.bf16.mxu0 0
    %763 = vmatpush1.bf16.msra.mxu0 %v740
    %764 = vmatprep.subr.bf16.mxu0 0
    %765 = vmatpush1.bf16.msra.mxu0 %v741
    %766 = vmatprep.subr.bf16.mxu0 0
    %767 = vmatpush1.bf16.msra.mxu0 0
    %768 = vmatprep.subr.bf16.mxu0 0
    %769 = vmatpush1.bf16.msra.mxu0 0
    %770 = vmatprep.subr.bf16.mxu0 0
    %771 = vmatpush1.bf16.msra.mxu0 0
    %772 = vmatprep.subr.bf16.mxu0 0
    %773 = vmatpush1.bf16.msra.mxu0 0
    %774 = vmatprep.subr.bf16.mxu0 0
    %775 = vmatpush1.bf16.msra.mxu0 0
    %776 = vmatprep.subr.bf16.mxu0 0
    %777 = vmatpush1.bf16.msra.mxu0 0
    %778 = vmatprep.subr.bf16.mxu0 0
    %779 = vmatpush1.bf16.msra.mxu0 0
    %780 = vmatprep.subr.bf16.mxu0 0
    %781 = vmatpush1.bf16.msra.mxu0 0
    %782 = vmatprep.mubr.bf16.mxu0 0
    %783 = vmatmul.mubr.bf16.gmra.mrb[0].mxu0 %v671
    %v784 = vpop.f32.mrb[0].mxu0
    %v785 = vadd.f32 %v700, %v784
    %v786 = vpop.f32.mrb[0].mxu0
    %v787 = vpop.f32.mrb[0].mxu0
    %v788 = vadd.f32 %v700, %v787
    %v789 = vpop.f32.mrb[0].mxu0
    %790 = vmatprep.mubr.bf16.mxu0 0
    %791 = vmatmul.mubr.bf16.gmra.mrb[0].mxu0 %v672
    %v792 = vpop.f32.mrb[0].mxu0
    %v793 = vadd.f32 %v700, %v792
    %v794 = vpop.f32.mrb[0].mxu0
    %v795 = vpop.f32.mrb[0].mxu0
    %v796 = vadd.f32 %v700, %v795
    %v797 = vpop.f32.mrb[0].mxu0
    %798 = vmatprep.mubr.bf16.mxu0 0
    %799 = vmatmul.mubr.bf16.gmra.mrb[0].mxu0 %v673
    %v800 = vpop.f32.mrb[0].mxu0
    %v801 = vadd.f32 %v700, %v800
    %v802 = vpop.f32.mrb[0].mxu0
    %v803 = vpop.f32.mrb[0].mxu0
    %v804 = vadd.f32 %v700, %v803
    %v805 = vpop.f32.mrb[0].mxu0
    %806 = vmatprep.mubr.bf16.mxu0 0
    %807 = vmatmul.mubr.bf16.gmra.mrb[0].mxu0 %v674
    %v808 = vpop.f32.mrb[0].mxu0
    %v809 = vadd.f32 %v700, %v808
    %v810 = vpop.f32.mrb[0].mxu0
    %v811 = vpop.f32.mrb[0].mxu0
    %v812 = vadd.f32 %v700, %v811
    %v813 = vpop.f32.mrb[0].mxu0
    %814 = vmatprep.mubr.bf16.mxu0 0
    %815 = vmatmul.mubr.bf16.gmra.mrb[0].mxu0 %v675
    %v816 = vpop.f32.mrb[0].mxu0
    %v817 = vadd.f32 %v700, %v816
    %v818 = vpop.f32.mrb[0].mxu0
    %v819 = vpop.f32.mrb[0].mxu0
    %v820 = vadd.f32 %v700, %v819
    %v821 = vpop.f32.mrb[0].mxu0
    %822 = vmatprep.mubr.bf16.mxu0 0
    %823 = vmatmul.mubr.bf16.gmra.mrb[0].mxu0 %v676
    %v824 = vpop.f32.mrb[0].mxu0
    %v825 = vadd.f32 %v700, %v824
    %v826 = vpop.f32.mrb[0].mxu0
    %v827 = vpop.f32.mrb[0].mxu0
    %v828 = vadd.f32 %v700, %v827
    %v829 = vpop.f32.mrb[0].mxu0
    %830 = vmatprep.mubr.bf16.mxu0 0
    %831 = vmatmul.mubr.bf16.gmra.mrb[0].mxu0 %v677
    %v832 = vpop.f32.mrb[0].mxu0
    %v833 = vadd.f32 %v700, %v832
    %v834 = vpop.f32.mrb[0].mxu0
    %v835 = vpop.f32.mrb[0].mxu0
    %v836 = vadd.f32 %v700, %v835
    %v837 = vpop.f32.mrb[0].mxu0
    %838 = vmatprep.mubr.bf16.mxu0 0
    %839 = vmatmul.mubr.bf16.gmra.mrb[0].mxu0 %v678
    %v840 = vpop.f32.mrb[0].mxu0
    %v841 = vadd.f32 %v700, %v840
    %v842 = vpop.f32.mrb[0].mxu0
    %v843 = vpop.f32.mrb[0].mxu0
    %v844 = vadd.f32 %v700, %v843
    %v845 = vpop.f32.mrb[0].mxu0
    %846 = vdwg.mxu0
    %v847 = vmax.f32 %v785, 0.0
    %v848 = vmax.f32 %v788, 0.0
    %v849 = vmax.f32 %v793, 0.0
    %v850 = vmax.f32 %v796, 0.0
    %v851 = vmax.f32 %v801, 0.0
    %v852 = vmax.f32 %v804, 0.0
    %v853 = vmax.f32 %v809, 0.0
    %v854 = vmax.f32 %v812, 0.0
    %v855 = vmax.f32 %v817, 0.0
    %v856 = vmax.f32 %v820, 0.0
    %v857 = vmax.f32 %v825, 0.0
    %v858 = vmax.f32 %v828, 0.0
    %v859 = vmax.f32 %v833, 0.0
    %v860 = vmax.f32 %v836, 0.0
    %v861 = vmax.f32 %v841, 0.0
    %v862 = vmax.f32 %v844, 0.0
    %v863 = vld [vmem:[%s7] sm:$0x1]
    %v865 = vlaneseq
    %v866 = vshrl.u32 %v865, 7
    %v867 = vsub.s32 0, %v866
    %v868 = vrot.slane %v863, %v867
    %v870 = vmul.f32 %v847, %v868
    %v871 = vmul.f32 %v848, %v868
    %v872 = vmul.f32 %v849, %v868
    %v873 = vmul.f32 %v850, %v868
    %v874 = vmul.f32 %v851, %v868
    %v875 = vmul.f32 %v852, %v868
    %v876 = vmul.f32 %v853, %v868
    %v877 = vmul.f32 %v854, %v868
    %v878 = vmul.f32 %v855, %v868
    %v879 = vmul.f32 %v856, %v868
    %v880 = vmul.f32 %v857, %v868
    %v881 = vmul.f32 %v858, %v868
    %v882 = vmul.f32 %v859, %v868
    %v883 = vmul.f32 %v860, %v868
    %v884 = vmul.f32 %v861, %v868
    %v885 = vmul.f32 %v862, %v868
    %886 = vadd.xlane.f32.xlu0 %v870
    %v887 = vpop.xlane.xlu0 %886
    %888 = vadd.xlane.f32.xlu0 %v871
    %v889 = vpop.xlane.xlu0 %888
    %890 = vadd.xlane.f32.xlu0 %v872
    %v891 = vpop.xlane.xlu0 %890
    %892 = vadd.xlane.f32.xlu0 %v873
    %v893 = vpop.xlane.xlu0 %892
    %894 = vadd.xlane.f32.xlu0 %v874
    %v895 = vpop.xlane.xlu0 %894
    %896 = vadd.xlane.f32.xlu0 %v875
    %v897 = vpop.xlane.xlu0 %896
    %898 = vadd.xlane.f32.xlu0 %v876
    %v899 = vpop.xlane.xlu0 %898
    %900 = vadd.xlane.f32.xlu0 %v877
    %v901 = vpop.xlane.xlu0 %900
    %902 = vadd.xlane.f32.xlu0 %v878
    %v903 = vpop.xlane.xlu0 %902
    %904 = vadd.xlane.f32.xlu0 %v879
    %v905 = vpop.xlane.xlu0 %904
    %906 = vadd.xlane.f32.xlu0 %v880
    %v907 = vpop.xlane.xlu0 %906
    %908 = vadd.xlane.f32.xlu0 %v881
    %v909 = vpop.xlane.xlu0 %908
    %910 = vadd.xlane.f32.xlu0 %v882
    %v911 = vpop.xlane.xlu0 %910
    %912 = vadd.xlane.f32.xlu0 %v883
    %v913 = vpop.xlane.xlu0 %912
    %914 = vadd.xlane.f32.xlu0 %v884
    %v915 = vpop.xlane.xlu0 %914
    %916 = vadd.xlane.f32.xlu0 %v885
    %v917 = vpop.xlane.xlu0 %916
    %v918 = vld [vmem:[#allocation2] sm:$0x1]
    %v920 = vlaneseq
    %v921 = vshrl.u32 %v920, 7
    %v922 = vsub.s32 0, %v921
    %v923 = vrot.slane %v918, %v922
    %v925 = vadd.f32 %v887, %v923
    %v926 = vadd.f32 %v889, %v923
    %v927 = vadd.f32 %v891, %v923
    %v928 = vadd.f32 %v893, %v923
    %v929 = vadd.f32 %v895, %v923
    %v930 = vadd.f32 %v897, %v923
    %v931 = vadd.f32 %v899, %v923
    %v932 = vadd.f32 %v901, %v923
    %v933 = vadd.f32 %v903, %v923
    %v934 = vadd.f32 %v905, %v923
    %v935 = vadd.f32 %v907, %v923
    %v936 = vadd.f32 %v909, %v923
    %v937 = vadd.f32 %v911, %v923
    %v938 = vadd.f32 %v913, %v923
    %v939 = vadd.f32 %v915, %v923
    %v940 = vadd.f32 %v917, %v923
    %v941 = vlaneseq
    %v942 = vshrl.u32 %v941, 7
    %v943 = vadd.s32 %v942, 8
    %v944 = vadd.s32 %v942, 16
    %v945 = vadd.s32 %v942, 24
    %v946 = vadd.s32 %v942, 32
    %v947 = vadd.s32 %v942, 40
    %v948 = vadd.s32 %v942, 48
    %v949 = vadd.s32 %v942, 56
    %v950 = vadd.s32 %v942, 64
    %v951 = vadd.s32 %v942, 72
    %v952 = vadd.s32 %v942, 80
    %v953 = vadd.s32 %v942, 88
    %v954 = vadd.s32 %v942, 96
    %v955 = vadd.s32 %v942, 104
    %v956 = vadd.s32 %v942, 112
    %v957 = vadd.s32 %v942, 120
    %vm958 = vcmp.lt.s32.totalorder %v942, 64
    %vm959 = vcmp.lt.s32.totalorder %v943, 64
    %vm960 = vcmp.lt.s32.totalorder %v944, 64
    %vm961 = vcmp.lt.s32.totalorder %v945, 64
    %vm962 = vcmp.lt.s32.totalorder %v946, 64
    %vm963 = vcmp.lt.s32.totalorder %v947, 64
    %vm964 = vcmp.lt.s32.totalorder %v948, 64
    %vm965 = vcmp.lt.s32.totalorder %v949, 64
    %vm966 = vcmp.lt.s32.totalorder %v950, 64
    %vm967 = vcmp.lt.s32.totalorder %v951, 64
    %vm968 = vcmp.lt.s32.totalorder %v952, 64
    %vm969 = vcmp.lt.s32.totalorder %v953, 64
    %vm970 = vcmp.lt.s32.totalorder %v954, 64
    %vm971 = vcmp.lt.s32.totalorder %v955, 64
    %vm972 = vcmp.lt.s32.totalorder %v956, 64
    %vm973 = vcmp.lt.s32.totalorder %v957, 64
    %v974 = vsel %vm958, %v925, 0.0
    %v975 = vsel %vm959, %v926, 0.0
    %v976 = vsel %vm960, %v927, 0.0
    %v977 = vsel %vm961, %v928, 0.0
    %v978 = vsel %vm962, %v929, 0.0
    %v979 = vsel %vm963, %v930, 0.0
    %v980 = vsel %vm964, %v931, 0.0
    %v981 = vsel %vm965, %v932, 0.0
    %v982 = vsel %vm966, %v933, 0.0
    %v983 = vsel %vm967, %v934, 0.0
    %v984 = vsel %vm968, %v935, 0.0
    %v985 = vsel %vm969, %v936, 0.0
    %v986 = vsel %vm970, %v937, 0.0
    %v987 = vsel %vm971, %v938, 0.0
    %v988 = vsel %vm972, %v939, 0.0
    %v989 = vsel %vm973, %v940, 0.0
    %vm990 = vcmask 7168
    %v991 = vsel %vm990, %v974, 0.0
    %v992 = vsel %vm990, %v975, 0.0
    %v993 = vadd.f32 %v991, %v992
    %v994 = vsel %vm990, %v976, 0.0
    %v995 = vadd.f32 %v993, %v994
    %v996 = vsel %vm990, %v977, 0.0
    %v997 = vadd.f32 %v995, %v996
    %v998 = vsel %vm990, %v978, 0.0
    %v999 = vadd.f32 %v997, %v998
    %v1000 = vsel %vm990, %v979, 0.0
    %v1001 = vadd.f32 %v999, %v1000
    %v1002 = vsel %vm990, %v980, 0.0
    %v1003 = vadd.f32 %v1001, %v1002
    %v1004 = vsel %vm990, %v981, 0.0
    %v1005 = vadd.f32 %v1003, %v1004
    %v1006 = vsel %vm990, %v982, 0.0
    %v1007 = vadd.f32 %v1005, %v1006
    %v1008 = vsel %vm990, %v983, 0.0
    %v1009 = vadd.f32 %v1007, %v1008
    %v1010 = vsel %vm990, %v984, 0.0
    %v1011 = vadd.f32 %v1009, %v1010
    %v1012 = vsel %vm990, %v985, 0.0
    %v1013 = vadd.f32 %v1011, %v1012
    %v1014 = vsel %vm990, %v986, 0.0
    %v1015 = vadd.f32 %v1013, %v1014
    %v1016 = vsel %vm990, %v987, 0.0
    %v1017 = vadd.f32 %v1015, %v1016
    %v1018 = vsel %vm990, %v988, 0.0
    %v1019 = vadd.f32 %v1017, %v1018
    %v1020 = vsel %vm990, %v989, 0.0
    %v1021 = vadd.f32 %v1019, %v1020
    %1022 = vadd.xlane.f32.xlu0 %v1021
    %v1023 = vpop.xlane.xlu0 %1022
    %v1024 = vrot.slane %v1023, 4
    %v1025 = vadd.f32 %v1023, %v1024
    %v1026 = vrot.slane %v1025, 2
    %v1027 = vadd.f32 %v1025, %v1026
    %v1028 = vrot.slane %v1027, 1
    %v1029 = vadd.f32 %v1027, %v1028
    %s1030 = vtos %v1029
    %v1031 = vstv %s1030
    %v1032 = vsel %vm958, -inf, %v925
    %v1033 = vsel %vm959, -inf, %v926
    %v1034 = vsel %vm960, -inf, %v927
    %v1035 = vsel %vm961, -inf, %v928
    %v1036 = vsel %vm962, -inf, %v929
    %v1037 = vsel %vm963, -inf, %v930
    %v1038 = vsel %vm964, -inf, %v931
    %v1039 = vsel %vm965, -inf, %v932
    %v1040 = vsel %vm966, -inf, %v933
    %v1041 = vsel %vm967, -inf, %v934
    %v1042 = vsel %vm968, -inf, %v935
    %v1043 = vsel %vm969, -inf, %v936
    %v1044 = vsel %vm970, -inf, %v937
    %v1045 = vsel %vm971, -inf, %v938
    %v1046 = vsel %vm972, -inf, %v939
    %v1047 = vsel %vm973, -inf, %v940
    %v1048 = vsel %vm990, %v1032, -inf
    %v1049 = vsel %vm990, %v1033, -inf
    %v1050 = vsel %vm990, %v1034, -inf
    %v1051 = vsel %vm990, %v1035, -inf
    %v1052 = vsel %vm990, %v1036, -inf
    %v1053 = vmax.f32 %v1048, %v1052
    %v1054 = vsel %vm990, %v1037, -inf
    %v1055 = vmax.f32 %v1049, %v1054
    %v1056 = vsel %vm990, %v1038, -inf
    %v1057 = vmax.f32 %v1050, %v1056
    %v1058 = vsel %vm990, %v1039, -inf
    %v1059 = vmax.f32 %v1051, %v1058
    %v1060 = vsel %vm990, %v1040, -inf
    %v1061 = vmax.f32 %v1053, %v1060
    %v1062 = vsel %vm990, %v1041, -inf
    %v1063 = vmax.f32 %v1055, %v1062
    %v1064 = vsel %vm990, %v1042, -inf
    %v1065 = vmax.f32 %v1057, %v1064
    %v1066 = vsel %vm990, %v1043, -inf
    %v1067 = vmax.f32 %v1059, %v1066
    %v1068 = vsel %vm990, %v1044, -inf
    %v1069 = vmax.f32 %v1061, %v1068
    %v1070 = vsel %vm990, %v1045, -inf
    %v1071 = vmax.f32 %v1063, %v1070
    %v1072 = vsel %vm990, %v1046, -inf
    %v1073 = vmax.f32 %v1065, %v1072
    %v1074 = vsel %vm990, %v1047, -inf
    %v1075 = vmax.f32 %v1067, %v1074
    %v1076 = vmax.f32 %v1069, %v1071
    %v1077 = vmax.f32 %v1073, %v1075
    %v1078 = vmax.f32 %v1076, %v1077
    %1079 = vmax.xlane.f32.xlu0 %v1078
    %v1080 = vpop.xlane.xlu0 %1079
    %v1081 = vrot.slane %v1080, 4
    %v1082 = vmax.f32 %v1080, %v1081
    %v1083 = vrot.slane %v1082, 2
    %v1084 = vmax.f32 %v1082, %v1083
    %v1085 = vrot.slane %v1084, 1
    %v1086 = vmax.f32 %v1084, %v1085
    %s1087 = vtos %v1086
    %v1088 = vstv %s1087
    %v1089 = vsub.f32 %v1032, %v1088
    %v1090 = vsub.f32 %v1033, %v1088
    %v1091 = vsub.f32 %v1034, %v1088
    %v1092 = vsub.f32 %v1035, %v1088
    %v1093 = vsub.f32 %v1036, %v1088
    %v1094 = vsub.f32 %v1037, %v1088
    %v1095 = vsub.f32 %v1038, %v1088
    %v1096 = vsub.f32 %v1039, %v1088
    %v1097 = vsub.f32 %v1040, %v1088
    %v1098 = vsub.f32 %v1041, %v1088
    %v1099 = vsub.f32 %v1042, %v1088
    %v1100 = vsub.f32 %v1043, %v1088
    %v1101 = vsub.f32 %v1044, %v1088
    %v1102 = vsub.f32 %v1045, %v1088
    %v1103 = vsub.f32 %v1046, %v1088
    %v1104 = vsub.f32 %v1047, %v1088
    %v1105 = vmul.f32 %v1089, 1.442695
    %v1106 = vpow.pop %v1105
    %v1107 = vmul.f32 %v1090, 1.442695
    %v1108 = vpow.pop %v1107
    %v1109 = vmul.f32 %v1091, 1.442695
    %v1110 = vpow.pop %v1109
    %v1111 = vmul.f32 %v1092, 1.442695
    %v1112 = vpow.pop %v1111
    %v1113 = vmul.f32 %v1093, 1.442695
    %v1114 = vpow.pop %v1113
    %v1115 = vmul.f32 %v1094, 1.442695
    %v1116 = vpow.pop %v1115
    %v1117 = vmul.f32 %v1095, 1.442695
    %v1118 = vpow.pop %v1117
    %v1119 = vmul.f32 %v1096, 1.442695
    %v1120 = vpow.pop %v1119
    %v1121 = vmul.f32 %v1097, 1.442695
    %v1122 = vpow.pop %v1121
    %v1123 = vmul.f32 %v1098, 1.442695
    %v1124 = vpow.pop %v1123
    %v1125 = vmul.f32 %v1099, 1.442695
    %v1126 = vpow.pop %v1125
    %v1127 = vmul.f32 %v1100, 1.442695
    %v1128 = vpow.pop %v1127
    %v1129 = vmul.f32 %v1101, 1.442695
    %v1130 = vpow.pop %v1129
    %v1131 = vmul.f32 %v1102, 1.442695
    %v1132 = vpow.pop %v1131
    %v1133 = vmul.f32 %v1103, 1.442695
    %v1134 = vpow.pop %v1133
    %v1135 = vmul.f32 %v1104, 1.442695
    %v1136 = vpow.pop %v1135
    %v1137 = vsel %vm990, %v1106, 0.0
    %v1138 = vsel %vm990, %v1108, 0.0
    %v1139 = vadd.f32 %v1137, %v1138
    %v1140 = vsel %vm990, %v1110, 0.0
    %v1141 = vadd.f32 %v1139, %v1140
    %v1142 = vsel %vm990, %v1112, 0.0
    %v1143 = vadd.f32 %v1141, %v1142
    %v1144 = vsel %vm990, %v1114, 0.0
    %v1145 = vadd.f32 %v1143, %v1144
    %v1146 = vsel %vm990, %v1116, 0.0
    %v1147 = vadd.f32 %v1145, %v1146
    %v1148 = vsel %vm990, %v1118, 0.0
    %v1149 = vadd.f32 %v1147, %v1148
    %v1150 = vsel %vm990, %v1120, 0.0
    %v1151 = vadd.f32 %v1149, %v1150
    %v1152 = vsel %vm990, %v1122, 0.0
    %v1153 = vadd.f32 %v1151, %v1152
    %v1154 = vsel %vm990, %v1124, 0.0
    %v1155 = vadd.f32 %v1153, %v1154
    %v1156 = vsel %vm990, %v1126, 0.0
    %v1157 = vadd.f32 %v1155, %v1156
    %v1158 = vsel %vm990, %v1128, 0.0
    %v1159 = vadd.f32 %v1157, %v1158
    %v1160 = vsel %vm990, %v1130, 0.0
    %v1161 = vadd.f32 %v1159, %v1160
    %v1162 = vsel %vm990, %v1132, 0.0
    %v1163 = vadd.f32 %v1161, %v1162
    %v1164 = vsel %vm990, %v1134, 0.0
    %v1165 = vadd.f32 %v1163, %v1164
    %v1166 = vsel %vm990, %v1136, 0.0
    %v1167 = vadd.f32 %v1165, %v1166
    %1168 = vadd.xlane.f32.xlu0 %v1167
    %v1169 = vpop.xlane.xlu0 %1168
    %v1170 = vrot.slane %v1169, 4
    %v1171 = vadd.f32 %v1169, %v1170
    %v1172 = vrot.slane %v1171, 2
    %v1173 = vadd.f32 %v1171, %v1172
    %v1174 = vrot.slane %v1173, 1
    %v1175 = vadd.f32 %v1173, %v1174
    %s1176 = vtos %v1175
    %v1177 = vstv %s1176
    %v1178 = vmul.f32 %v1031, 0.015625
    %v1179 = vmul.f32 %v1177, 0.015625
    %v1180 = vlog2.pop %v1179
    %v1181 = vmul.f32 %v1180, 0.6931472
    %v1182 = vadd.f32 %v1088, %v1181
    %v1183 = vsub.f32 %v1178, %v1182
    %vm1184 = vcmask 0
    %1185 = vst.msk [vmem:[#allocation3] sm:$0x1] %vm1184, %v1183
    // Predicated region
    $region38: #{mine_forward.1} parent=1 // pred_check
      _
    $region39: #{mine_forward.1} parent=1 // pred_check_branch
      %1187 = sbr.rel (0) target = $region41
    $region40: #{mine_forward.1} parent=1 // pred_region
      %s1189 = ssub.s32 16, 16
      %1190 = vsyncadd [#allocation4], %s1189
      %s1192 = sshll.u32 [#allocation3], 4
      %s1193 = int_to_ptr.vmem [resolvable:$true] %s1192
      %1195 = dma.vmem_to_hbm [thread:$0]  %s1193, 16, %s9, [#allocation4]
    $region41: #{mine_forward.1} parent=1 // pred_fallthru
      _
    // Predicated region
    $region42: #{mine_forward.1} parent=1 // pred_check
      _
    $region43: #{mine_forward.1} parent=1 // pred_check_branch
      %1197 = sbr.rel (0) target = $region45
    $region44: #{mine_forward.1} parent=1 // pred_region
      %1198 = dma.done [#allocation4], 16
    $region45: #{mine_forward.1} parent=1 // pred_fallthru
      _
    %1199 = vsyncpa [#allocation4], 1

</llo_original>
